<compile_context>
chip_gen: v6e
topology: v6e:2x2x1
jax: 0.10.0
libtpu: 0.0.40
codegen_flags: <defaults>
</compile_context>

<pallas_src>
import functools

import jax
import jax.numpy as jnp
from jax.experimental import pallas as pl
from jax.experimental.pallas import tpu as pltpu

EPS = 1e-6  # RMSNorm epsilon


def _round_up(x: int, m: int) -> int:
    return ((x + m - 1) // m) * m


def _vmem_capacity_bytes() -> int:
    """Best-effort query of per-core VMEM capacity; conservative fallback."""
    try:
        info = pltpu.get_tpu_info()
        cap = getattr(info, "vmem_capacity_bytes", None)
        if cap:
            return int(cap)
    except Exception:
        pass
    return 64 << 20  # assume the smallest (v7x-like) part if the query fails


def _addnorm_kernel(x_ref, res_ref, w_ref, o_ref, *, inv_d, eps):
    # x_ref/res_ref/o_ref: (tile_rows, d_model); w_ref: (1, d_model) f32.
    # Residual add in the input dtype (matches PyTorch `x + res`), then f32.
    s = (x_ref[...] + res_ref[...]).astype(jnp.float32)
    # sum * (1/d_model) instead of mean keeps the divide off the VALU;
    # rsqrt goes to the EUP (free slot on this DMA-bound kernel).
    mean_sq = jnp.sum(s * s, axis=-1, keepdims=True) * inv_d
    inv_rms = jax.lax.rsqrt(mean_sq + eps)
    o_ref[...] = (s * inv_rms * w_ref[...]).astype(o_ref.dtype)


def _choose_tile_rows(rows: int, d_model: int, itemsize: int,
                      target_f32_bytes: int) -> int:
    # Sublane packing: 8 rows for 4-byte, 16 for 2-byte, 32 for 1-byte dtypes.
    sub = max(8, 32 // itemsize)
    # Target on the f32-equivalent working tile (keeps the f32 temporaries —
    # the dominant VMEM consumer for narrow dtypes — bounded independent of
    # the input dtype).
    tile = max(sub, (target_f32_bytes // (d_model * 4)) // sub * sub)
    tile = min(tile, 4096)                       # bytes-based cap, not 1024 rows
    # Guarantee >= 4 grid steps when rows allow it (2 TCs x double buffering),
    # so the parallel grid axis can shard across v7x's two TensorCores.
    min_grid_steps = 4
    if rows >= min_grid_steps * sub:
        tile = min(tile, _round_up(pl.cdiv(rows, min_grid_steps), sub))
    tile = min(tile, _round_up(rows, sub))       # don't exceed the row count
    return max(tile, sub)


def add_norm(x, res, weight, *, tile_rows=None, eps=EPS):
    """x, res: (batch, seq, d_model); weight: (d_model,). Returns RMSNorm(x + res)."""
    batch, seq, d_model = x.shape
    rows = batch * seq
    itemsize = jnp.dtype(x.dtype).itemsize
    sub = max(8, 32 // itemsize)

    vmem_cap = _vmem_capacity_bytes()
    small_vmem = vmem_cap <= (80 << 20)          # v7x-like (64 MiB) parts
    target_f32_bytes = (4 << 20) if small_vmem else (8 << 20)
    vmem_limit_cap = (48 << 20) if small_vmem else (96 << 20)

    if tile_rows is None:
        tile_rows = _choose_tile_rows(rows, d_model, itemsize, target_f32_bytes)
    else:
        tile_rows = max(sub, _round_up(tile_rows, sub))
        tile_rows = min(tile_rows, _round_up(rows, sub))

    grid = pl.cdiv(rows, tile_rows)              # partial last block handled by Pallas

    # No jnp.pad anywhere: reshape is metadata-only, weight cast is tiny.
    x2 = x.reshape(rows, d_model)
    r2 = res.reshape(rows, d_model)
    w2 = weight.astype(jnp.float32).reshape(1, d_model)

    # Explicit VMEM budget: double-buffered x/res/out tiles + resident weight
    # + f32 temporaries + headroom, clamped generation-aware.
    tile_io_bytes = tile_rows * d_model * itemsize
    tile_f32_bytes = tile_rows * d_model * 4
    vmem_bytes = 3 * 2 * tile_io_bytes + 3 * tile_f32_bytes + d_model * 4 + (4 << 20)
    vmem_bytes = int(min(max(vmem_bytes, 8 << 20), vmem_limit_cap))

    kernel = functools.partial(_addnorm_kernel, inv_d=1.0 / float(d_model), eps=eps)

    # TODO(synk): optionally sweep pipeline_mode=pl.Buffered(3) on the x/res
    # specs on v7x once tile sizing is settled (expected only a few %).
    out = pl.pallas_call(
        kernel,
        out_shape=jax.ShapeDtypeStruct((rows, d_model), x.dtype),
        grid_spec=pltpu.PrefetchScalarGridSpec(
            num_scalar_prefetch=0,
            grid=(grid,),
            in_specs=[
                pl.BlockSpec((tile_rows, d_model), lambda i: (i, 0)),
                pl.BlockSpec((tile_rows, d_model), lambda i: (i, 0)),
                pl.BlockSpec((1, d_model), lambda i: (0, 0)),   # weight resident
            ],
            out_specs=pl.BlockSpec((tile_rows, d_model), lambda i: (i, 0)),
        ),
        compiler_params=pltpu.CompilerParams(
            dimension_semantics=("parallel",),   # shards rows across v7x's 2 TCs
            vmem_limit_bytes=vmem_bytes,
        ),
    )(x2, r2, w2)

    return out.reshape(batch, seq, d_model)


def add_norm_ref(x, res, weight):
    s = (x + res).astype(jnp.float32)
    inv = jax.lax.rsqrt(jnp.mean(s * s, axis=-1, keepdims=True) + EPS)
    return (s * inv * weight.astype(jnp.float32)).astype(x.dtype)


if __name__ == "__main__":
    batch, seq, d_model = 2, 8, 32
    key = jax.random.PRNGKey(0)
    kx, kr, kw = jax.random.split(key, 3)

    x = jax.random.normal(kx, (batch, seq, d_model), dtype=jnp.float32)
    res = jax.random.normal(kr, (batch, seq, d_model), dtype=jnp.float32)
    # Deterministic, non-trivial RMSNorm scale parameter (nn.Parameter of shape (d_model,)).
    weight = 1.0 + 0.01 * jax.random.normal(kw, (d_model,), dtype=jnp.float32)

    out = add_norm(x, res, weight)
    jax.block_until_ready(out)

    ref = add_norm_ref(x, res, weight)
    assert out.shape == ref.shape, "shape mismatch vs reference"
    assert jnp.allclose(out, ref, atol=1e-5, rtol=1e-5), "mismatch vs reference"
    print("KERNEL_OK")
</pallas_src>

<mosaic_0001>
module attributes {stable_mosaic.version = 11 : i64} {
  func.func @_addnorm_kernel(%arg0: i32, %arg1: memref<16x32xf32, #tpu.memory_space<vmem>>, %arg2: memref<16x32xf32, #tpu.memory_space<vmem>>, %arg3: memref<1x32xf32, #tpu.memory_space<vmem>>, %arg4: memref<16x32xf32, #tpu.memory_space<vmem>>) attributes {dimension_semantics = [#tpu.dimension_semantics<parallel>], iteration_bounds = array<i64: 1>, scalar_prefetch = 0 : i64, scratch_operands = 0 : i64, tpu.core_type = #tpu.core_type<tc>, window_params = [{transform_indices = @transform_0, window_bounds = array<i64: 16, 32>}, {transform_indices = @transform_1, window_bounds = array<i64: 16, 32>}, {pipeline_mode = #tpu.pipeline_mode<synchronous>, transform_indices = @transform_2, window_bounds = array<i64: 1, 32>}, {transform_indices = @transform_3, window_bounds = array<i64: 16, 32>}]} {
    %c0 = arith.constant 0 : index
    %c0_0 = arith.constant 0 : index
    %0 = vector.load %arg1[%c0, %c0_0] : memref<16x32xf32, #tpu.memory_space<vmem>>, vector<16x32xf32>
    %c0_1 = arith.constant 0 : index
    %c0_2 = arith.constant 0 : index
    %1 = vector.load %arg2[%c0_1, %c0_2] : memref<16x32xf32, #tpu.memory_space<vmem>>, vector<16x32xf32>
    %2 = arith.addf %0, %1 : vector<16x32xf32>
    %3 = arith.mulf %2, %2 : vector<16x32xf32>
    %cst = arith.constant dense<0.000000e+00> : vector<16xf32>
    %4 = vector.multi_reduction <add>, %3, %cst [1] : vector<16x32xf32> to vector<16xf32>
    %5 = vector.shape_cast %4 : vector<16xf32> to vector<16x1xf32>
    %cst_3 = arith.constant 3.125000e-02 : f32
    %6 = vector.broadcast %cst_3 : f32 to vector<16x1xf32>
    %7 = arith.mulf %5, %6 : vector<16x1xf32>
    %cst_4 = arith.constant 9.99999997E-7 : f32
    %8 = vector.broadcast %cst_4 : f32 to vector<16x1xf32>
    %9 = arith.addf %7, %8 : vector<16x1xf32>
    %10 = math.rsqrt %9 : vector<16x1xf32>
    %11 = vector.broadcast %10 : vector<16x1xf32> to vector<16x32xf32>
    %12 = arith.mulf %2, %11 : vector<16x32xf32>
    %c0_5 = arith.constant 0 : index
    %c0_6 = arith.constant 0 : index
    %13 = vector.load %arg3[%c0_5, %c0_6] : memref<1x32xf32, #tpu.memory_space<vmem>>, vector<1x32xf32>
    %14 = vector.broadcast %13 : vector<1x32xf32> to vector<16x32xf32>
    %15 = arith.mulf %12, %14 : vector<16x32xf32>
    %c0_7 = arith.constant 0 : index
    %c0_8 = arith.constant 0 : index
    %16 = vector.load %arg4[%c0_7, %c0_8] : memref<16x32xf32, #tpu.memory_space<vmem>>, vector<16x32xf32>
    tpu.vector_store %arg4[%c0_7, %c0_8], %15 {strides = array<i32>} : memref<16x32xf32, #tpu.memory_space<vmem>>, vector<16x32xf32>,
    return
  }
  func.func @transform_0(%arg0: i32) -> (i32, i32) {
    %c0_i32 = arith.constant 0 : i32
    %c0_i32_0 = arith.constant 0 : i32
    return %arg0, %c0_i32 : i32, i32
  }
  func.func @transform_1(%arg0: i32) -> (i32, i32) {
    %c0_i32 = arith.constant 0 : i32
    %c0_i32_0 = arith.constant 0 : i32
    return %arg0, %c0_i32 : i32, i32
  }
  func.func @transform_2(%arg0: i32) -> (i32, i32) {
    %c0_i32 = arith.constant 0 : i32
    %c0_i32_0 = arith.constant 0 : i32
    %c0_i32_1 = arith.constant 0 : i32
    return %c0_i32, %c0_i32_0 : i32, i32
  }
  func.func @transform_3(%arg0: i32) -> (i32, i32) {
    %c0_i32 = arith.constant 0 : i32
    %c0_i32_0 = arith.constant 0 : i32
    return %arg0, %c0_i32 : i32, i32
  }
}

</mosaic_0001>

<llo_original>
// kernel: tpu_custom_call.1
$region0: #{tpu_custom_call.1}
  #allocation0 [shape = 'u32[]', space=smem, size = 0x4, offset = 0x4, fixed_abs, tag = 'smem constant byte address 0x4 - core index']
  #allocation1 [shape = 'u32[144,128]{1,0:T(1,128)}', space=vmem, size = 0x12000, scoped, tag = 'internal scratch']
  %s0 = inlined_call_operand.hbm [shape: f32[16,32], index: 0, kind: input, shape index: {}]
  %s1 = inlined_call_operand.hbm [shape: f32[16,32], index: 1, kind: input, shape index: {}]
  %s2 = inlined_call_operand.vmem [shape: f32[1,32], index: 2, kind: input, shape index: {}]
  %s3 = inlined_call_operand.hbm [shape: f32[16,32], index: 3, kind: output, shape index: {}]
  %s4 = sld [smem:[#allocation0]]
  $region30: #{tpu_custom_call.1} parent=0
    _
  %s6 = ssub.s32 1, %s4
  %s7 = scalar_select 0, %s6, %s4
  $region1: #{tpu_custom_call.1} parent=0
    #allocation2 [shape = 'u8[8192]{0}', space=vmem, size = 0x2000, scoped, tag = 'input window, operand 0, single buffered']
    #allocation3 [shape = 's32[1]{0}', space=sflag, size = 0x4, scoped, tag = 'scoped memory for tpu_custom_call.1']
    #allocation4 [shape = 's32[1]{0}', space=sflag, size = 0x4, scoped, tag = 'scoped memory for tpu_custom_call.1']
    #allocation5 [shape = 'u8[8192]{0}', space=vmem, size = 0x2000, scoped, tag = 'input window, operand 1, single buffered']
    #allocation6 [shape = 's32[1]{0}', space=sflag, size = 0x4, scoped, tag = 'scoped memory for tpu_custom_call.1']
    #allocation7 [shape = 'u8[8192]{0}', space=vmem, size = 0x2000, scoped, tag = 'output window, operand 0, single buffered']
    %8 = vsyncpa [#allocation3], 0
    %9 = vsyncpa [#allocation6], 0
    %10 = vsyncpa [#allocation4], 0
    // Predicated region
    $region2: #{tpu_custom_call.1} parent=1 // pred_check
      _
    $region3: #{tpu_custom_call.1} parent=1 // pred_check_branch
      %12 = sbr.rel (0) target = $region5
    $region4: #{tpu_custom_call.1} parent=1 // pred_region
      %s14 = ssub.s32 256, 256
      %15 = vsyncadd [#allocation3], %s14
      %s16 = sshll.u32 [#allocation2], 4
      %s17 = int_to_ptr.vmem [resolvable:$true] %s16
      %22 = dma.hbm_to_vmem [thread:$0]  %s0, 256, %s17, [#allocation3], 128, 128, 8
    $region5: #{tpu_custom_call.1} parent=1 // pred_fallthru
      _
    // Predicated region
    $region6: #{tpu_custom_call.1} parent=1 // pred_check
      _
    $region7: #{tpu_custom_call.1} parent=1 // pred_check_branch
      %24 = sbr.rel (0) target = $region9
    $region8: #{tpu_custom_call.1} parent=1 // pred_region
      %s26 = ssub.s32 256, 256
      %27 = vsyncadd [#allocation6], %s26
      %s28 = sshll.u32 [#allocation5], 4
      %s29 = int_to_ptr.vmem [resolvable:$true] %s28
      %34 = dma.hbm_to_vmem [thread:$0]  %s1, 256, %s29, [#allocation6], 128, 128, 8
    $region9: #{tpu_custom_call.1} parent=1 // pred_fallthru
      _
    // Predicated region
    $region10: #{tpu_custom_call.1} parent=1 // pred_check
      _
    $region11: #{tpu_custom_call.1} parent=1 // pred_check_branch
      %36 = sbr.rel (0) target = $region13
    $region12: #{tpu_custom_call.1} parent=1 // pred_region
      _
    $region13: #{tpu_custom_call.1} parent=1 // pred_fallthru
      _
    // Predicated region
    $region14: #{tpu_custom_call.1} parent=1 // pred_check
      _
    $region15: #{tpu_custom_call.1} parent=1 // pred_check_branch
      %38 = sbr.rel (0) target = $region17
    $region16: #{tpu_custom_call.1} parent=1 // pred_region
      %39 = dma.done [#allocation3], 256
    $region17: #{tpu_custom_call.1} parent=1 // pred_fallthru
      _
    // Predicated region
    $region18: #{tpu_custom_call.1} parent=1 // pred_check
      _
    $region19: #{tpu_custom_call.1} parent=1 // pred_check_branch
      %41 = sbr.rel (0) target = $region21
    $region20: #{tpu_custom_call.1} parent=1 // pred_region
      %42 = dma.done [#allocation6], 256
    $region21: #{tpu_custom_call.1} parent=1 // pred_fallthru
      _
    %v43 = vld [vmem:[#allocation2] sm:$0xff]
    %v44 = vld [vmem:[#allocation2 + $0x8] sm:$0xff]
    %v45 = vld [vmem:[#allocation5] sm:$0xff]
    %v46 = vld [vmem:[#allocation5 + $0x8] sm:$0xff]
    %v47 = vadd.f32 %v43, %v45
    %v48 = vadd.f32 %v44, %v46
    %v49 = vmul.f32 %v47, %v47
    %v50 = vmul.f32 %v48, %v48
    %vm51 = vcmask 261120
    %v52 = vsel %vm51, %v49, 0.0
    %53 = vadd.xlane.f32.xlu0 %v52
    %v54 = vpop.xlane.xlu0 %53
    %v55 = vsel %vm51, %v50, 0.0
    %56 = vadd.xlane.f32.xlu0 %v55
    %v57 = vpop.xlane.xlu0 %56
    %v58 = vmul.f32 %v54, 0.03125
    %v59 = vmul.f32 %v57, 0.03125
    %v60 = vadd.f32 %v58, 1e-06
    %v61 = vadd.f32 %v59, 1e-06
    %v62 = vrsqrt.pop %v60
    %v63 = vrsqrt.pop %v61
    %v64 = vmul.f32 %v47, %v62
    %v65 = vmul.f32 %v48, %v63
    %v66 = vld [vmem:[%s2] sm:$0x1]
    %v68 = vlaneseq
    %v69 = vshrl.u32 %v68, 7
    %v70 = vsub.s32 0, %v69
    %v71 = vrot.slane %v66, %v70
    %v73 = vmul.f32 %v64, %v71
    %v74 = vmul.f32 %v65, %v71
    %75 = vst.msk [vmem:[#allocation7] sm:$0xff] %vm51, %v73
    %76 = vst.msk [vmem:[#allocation7 + $0x8] sm:$0xff] %vm51, %v74
    // Predicated region
    $region22: #{tpu_custom_call.1} parent=1 // pred_check
      _
    $region23: #{tpu_custom_call.1} parent=1 // pred_check_branch
      %78 = sbr.rel (0) target = $region25
    $region24: #{tpu_custom_call.1} parent=1 // pred_region
      %s80 = ssub.s32 256, 256
      %81 = vsyncadd [#allocation4], %s80
      %s82 = sshll.u32 [#allocation7], 4
      %s83 = int_to_ptr.vmem [resolvable:$true] %s82
      %88 = dma.vmem_to_hbm [thread:$0]  %s83, 256, %s3, [#allocation4], 128, 128, 8
    $region25: #{tpu_custom_call.1} parent=1 // pred_fallthru
      _
    // Predicated region
    $region26: #{tpu_custom_call.1} parent=1 // pred_check
      _
    $region27: #{tpu_custom_call.1} parent=1 // pred_check_branch
      %90 = sbr.rel (0) target = $region29
    $region28: #{tpu_custom_call.1} parent=1 // pred_region
      %91 = dma.done [#allocation4], 256
    $region29: #{tpu_custom_call.1} parent=1 // pred_fallthru
      _
    %92 = vsyncpa [#allocation3], 1
    %93 = vsyncpa [#allocation6], 1
    %94 = vsyncpa [#allocation4], 1

</llo_original>
